<compile_context>
chip_gen: v7x
topology: tpu7x:2x2x1
jax: 0.10.0
libtpu: 0.0.40
codegen_flags: <defaults>
</compile_context>

<pallas_src>
import jax
import jax.numpy as jnp
from jax.experimental import pallas as pl
from jax.experimental.pallas import tpu as pltpu

IN_DIM = 10
HID_DIM = 50
OUT_DIM = 10

DEFAULT_TILE_B = 16384       # rows of batch per grid step (multiple of 128)
MAX_TILE_B = 32768           # safe ceiling for v7x (64 MiB VMEM); v5e/v6e tolerate more
VMEM_LIMIT_BYTES = 48 << 20  # well above the <=12 MiB working set, below v7x physical
PALLAS_MIN_BATCH = 1024      # below this, XLA's fused dot->relu->dot wins


def _round_up(n: int, m: int) -> int:
    return ((n + m - 1) // m) * m


def _pick_tile(batch: int, tile_b: int) -> int:
    """Batch tile: multiple of 128, <= MAX_TILE_B, and small enough that the
    grid has >= 2 steps whenever B allows it (v7x megacore)."""
    tile_b = max(128, _round_up(min(tile_b, MAX_TILE_B), 128))
    half = max(128, _round_up(pl.cdiv(batch, 2), 128))
    return min(tile_b, half)


def mlp_kernel(x_ref, w1_ref, b1_ref, w2_ref, b2_ref, o_ref):
    # x_ref : (IN_DIM,  TILE_B)   batch-last slab
    # w1_ref: (HID_DIM, IN_DIM)   fc1.weight (PyTorch layout)
    # b1_ref: (HID_DIM, 1)
    # w2_ref: (OUT_DIM, HID_DIM)  fc2.weight
    # b2_ref: (OUT_DIM, 1)
    # o_ref : (OUT_DIM, TILE_B)
    h = jnp.dot(w1_ref[...], x_ref[...], preferred_element_type=jnp.float32)
    h = jnp.maximum(h + b1_ref[...], 0.0)          # bias broadcast + ReLU (f32)
    y = jnp.dot(w2_ref[...], h, preferred_element_type=jnp.float32)
    o_ref[...] = (y + b2_ref[...]).astype(o_ref.dtype)


def _pallas_forward_batch_last(x_t, w1, b1, w2, b2, *, tile_b, io_dtype=None):
    """Core kernel call. x_t: (IN_DIM, B) -> (OUT_DIM, B). No wrapper HBM passes."""
    batch = x_t.shape[1]
    tile = _pick_tile(batch, tile_b)
    grid = (pl.cdiv(batch, tile),)

    caller_dtype = x_t.dtype
    if io_dtype is not None:
        x_t = x_t.astype(io_dtype)   # optional bf16 HBM I/O; compute stays f32

    out_t = pl.pallas_call(
        mlp_kernel,
        out_shape=jax.ShapeDtypeStruct((OUT_DIM, batch), x_t.dtype),
        grid=grid,
        in_specs=[
            # x slab marches along the batch (lane) axis; last block may be ragged.
            pl.BlockSpec((IN_DIM, tile), lambda i: (0, i)),
            # Weights / biases: constant index_map -> stay VMEM-resident.
            pl.BlockSpec((HID_DIM, IN_DIM), lambda i: (0, 0)),
            pl.BlockSpec((HID_DIM, 1), lambda i: (0, 0)),
            pl.BlockSpec((OUT_DIM, HID_DIM), lambda i: (0, 0)),
            pl.BlockSpec((OUT_DIM, 1), lambda i: (0, 0)),
        ],
        out_specs=pl.BlockSpec((OUT_DIM, tile), lambda i: (0, i)),
        compiler_params=pltpu.CompilerParams(
            dimension_semantics=("parallel",),     # batch steps independent
            vmem_limit_bytes=VMEM_LIMIT_BYTES,
        ),
    )(x_t, w1, b1.reshape(HID_DIM, 1), w2, b2.reshape(OUT_DIM, 1))

    if io_dtype is not None:
        out_t = out_t.astype(caller_dtype)
    return out_t


def simple_model_forward_batch_last(x_t, w1, b1, w2, b2, *,
                                    tile_b=DEFAULT_TILE_B, io_dtype=None):
    """Batch-last API: x_t (IN_DIM, B) -> (OUT_DIM, B). Zero wrapper transposes."""
    return _pallas_forward_batch_last(x_t, w1, b1, w2, b2,
                                      tile_b=tile_b, io_dtype=io_dtype)


def simple_model_forward(x, w1, b1, w2, b2, *, tile_b=DEFAULT_TILE_B,
                         io_dtype=None, force_pallas=False):
    """PyTorch-convention forward: x (B, IN_DIM) -> (B, OUT_DIM).

    w1: (HID_DIM, IN_DIM) = fc1.weight, b1: (HID_DIM,) = fc1.bias
    w2: (OUT_DIM, HID_DIM) = fc2.weight, b2: (OUT_DIM,) = fc2.bias
    """
    batch = x.shape[0]
    if batch < PALLAS_MIN_BATCH and not force_pallas:
        # Tiny batch: a standalone pallas_call is launch/transpose dominated.
        return jnp.maximum(x @ w1.T + b1, 0.0) @ w2.T + b2

    out_t = _pallas_forward_batch_last(x.T, w1, b1, w2, b2,
                                       tile_b=tile_b, io_dtype=io_dtype)
    return out_t.T


def init_params(key):
    """Deterministic init mirroring nn.Linear default (uniform +/- 1/sqrt(fan_in)),
    stored in native PyTorch layout (out_features, in_features)."""
    k1, k2, k3, k4 = jax.random.split(key, 4)
    bound1 = 1.0 / jnp.sqrt(IN_DIM)
    bound2 = 1.0 / jnp.sqrt(HID_DIM)
    w1 = jax.random.uniform(k1, (HID_DIM, IN_DIM), jnp.float32, -bound1, bound1)
    b1 = jax.random.uniform(k2, (HID_DIM,), jnp.float32, -bound1, bound1)
    w2 = jax.random.uniform(k3, (OUT_DIM, HID_DIM), jnp.float32, -bound2, bound2)
    b2 = jax.random.uniform(k4, (OUT_DIM,), jnp.float32, -bound2, bound2)
    return w1, b1, w2, b2


if __name__ == "__main__":
    key = jax.random.PRNGKey(0)
    k_x, k_x2, k_p = jax.random.split(key, 3)
    w1, b1, w2, b2 = init_params(k_p)

    def ref(x):
        return jnp.maximum(x @ w1.T + b1, 0.0) @ w2.T + b2

    # Small batch consistent with the module; force the Pallas path so the
    # kernel (single ragged block, tile=128) is actually exercised.
    x_small = jax.random.normal(k_x, (8, IN_DIM), jnp.float32)
    out_small = jax.block_until_ready(
        simple_model_forward(x_small, w1, b1, w2, b2, force_pallas=True))
    assert out_small.shape == (8, OUT_DIM)
    assert jnp.allclose(out_small, ref(x_small), atol=1e-4, rtol=1e-5)

    # Ragged, multi-step grid (2 steps, partial final block, no jnp.pad).
    x_big = jax.random.normal(k_x2, (1000, IN_DIM), jnp.float32)
    out_big = jax.block_until_ready(
        simple_model_forward(x_big, w1, b1, w2, b2, force_pallas=True))
    assert out_big.shape == (1000, OUT_DIM)
    assert jnp.allclose(out_big, ref(x_big), atol=1e-4, rtol=1e-5)

    # Batch-last entry point (no wrapper transposes at all).
    out_bl = jax.block_until_ready(
        simple_model_forward_batch_last(x_big.T, w1, b1, w2, b2))
    assert out_bl.shape == (OUT_DIM, 1000)
    assert jnp.allclose(out_bl, ref(x_big).T, atol=1e-4, rtol=1e-5)

    print("KERNEL_OK")
</pallas_src>

<mosaic_0001>
module attributes {stable_mosaic.version = 11 : i64} {
  func.func @mlp_kernel(%arg0: i32, %arg1: memref<10x128xf32, #tpu.memory_space<vmem>>, %arg2: memref<50x10xf32, #tpu.memory_space<vmem>>, %arg3: memref<50x1xf32, #tpu.memory_space<vmem>>, %arg4: memref<10x50xf32, #tpu.memory_space<vmem>>, %arg5: memref<10x1xf32, #tpu.memory_space<vmem>>, %arg6: memref<10x128xf32, #tpu.memory_space<vmem>>) attributes {dimension_semantics = [#tpu.dimension_semantics<parallel>], iteration_bounds = array<i64: 1>, scalar_prefetch = 0 : i64, scratch_operands = 0 : i64, tpu.core_type = #tpu.core_type<tc>, window_params = [{transform_indices = @transform_0, window_bounds = array<i64: 10, 128>}, {pipeline_mode = #tpu.pipeline_mode<synchronous>, transform_indices = @transform_1, window_bounds = array<i64: 50, 10>}, {pipeline_mode = #tpu.pipeline_mode<synchronous>, transform_indices = @transform_2, window_bounds = array<i64: 50, 1>}, {pipeline_mode = #tpu.pipeline_mode<synchronous>, transform_indices = @transform_3, window_bounds = array<i64: 10, 50>}, {pipeline_mode = #tpu.pipeline_mode<synchronous>, transform_indices = @transform_4, window_bounds = array<i64: 10, 1>}, {transform_indices = @transform_5, window_bounds = array<i64: 10, 128>}]} {
    %c0 = arith.constant 0 : index
    %c0_0 = arith.constant 0 : index
    %0 = vector.load %arg2[%c0, %c0_0] : memref<50x10xf32, #tpu.memory_space<vmem>>, vector<50x10xf32>
    %c0_1 = arith.constant 0 : index
    %c0_2 = arith.constant 0 : index
    %1 = vector.load %arg1[%c0_1, %c0_2] : memref<10x128xf32, #tpu.memory_space<vmem>>, vector<10x128xf32>
    %cst = arith.constant dense<0.000000e+00> : vector<50x128xf32>
    %2 = tpu.matmul %0, %1, %cst {dimension_numbers = #tpu.dot_dimension_numbers<[1], [0], [0], [1], [0, 0, 1, 1], [], []>} : vector<50x10xf32>, vector<10x128xf32>, vector<50x128xf32> -> vector<50x128xf32>
    %c0_3 = arith.constant 0 : index
    %c0_4 = arith.constant 0 : index
    %3 = vector.load %arg3[%c0_3, %c0_4] : memref<50x1xf32, #tpu.memory_space<vmem>>, vector<50x1xf32>
    %4 = vector.broadcast %3 : vector<50x1xf32> to vector<50x128xf32>
    %5 = arith.addf %2, %4 : vector<50x128xf32>
    %cst_5 = arith.constant 0.000000e+00 : f32
    %6 = vector.broadcast %cst_5 : f32 to vector<50x128xf32>
    %7 = arith.maximumf %5, %6 : vector<50x128xf32>
    %c0_6 = arith.constant 0 : index
    %c0_7 = arith.constant 0 : index
    %8 = vector.load %arg4[%c0_6, %c0_7] : memref<10x50xf32, #tpu.memory_space<vmem>>, vector<10x50xf32>
    %cst_8 = arith.constant dense<0.000000e+00> : vector<10x128xf32>
    %9 = tpu.matmul %8, %7, %cst_8 {dimension_numbers = #tpu.dot_dimension_numbers<[1], [0], [0], [1], [0, 0, 1, 1], [], []>} : vector<10x50xf32>, vector<50x128xf32>, vector<10x128xf32> -> vector<10x128xf32>
    %c0_9 = arith.constant 0 : index
    %c0_10 = arith.constant 0 : index
    %10 = vector.load %arg5[%c0_9, %c0_10] : memref<10x1xf32, #tpu.memory_space<vmem>>, vector<10x1xf32>
    %11 = vector.broadcast %10 : vector<10x1xf32> to vector<10x128xf32>
    %12 = arith.addf %9, %11 : vector<10x128xf32>
    %c0_11 = arith.constant 0 : index
    %c0_12 = arith.constant 0 : index
    %13 = vector.load %arg6[%c0_11, %c0_12] : memref<10x128xf32, #tpu.memory_space<vmem>>, vector<10x128xf32>
    tpu.vector_store %arg6[%c0_11, %c0_12], %12 {strides = array<i32>} : memref<10x128xf32, #tpu.memory_space<vmem>>, vector<10x128xf32>,
    return
  }
  func.func @transform_0(%arg0: i32) -> (i32, i32) {
    %c0_i32 = arith.constant 0 : i32
    %c0_i32_0 = arith.constant 0 : i32
    return %c0_i32, %arg0 : i32, i32
  }
  func.func @transform_1(%arg0: i32) -> (i32, i32) {
    %c0_i32 = arith.constant 0 : i32
    %c0_i32_0 = arith.constant 0 : i32
    %c0_i32_1 = arith.constant 0 : i32
    return %c0_i32, %c0_i32_0 : i32, i32
  }
  func.func @transform_2(%arg0: i32) -> (i32, i32) {
    %c0_i32 = arith.constant 0 : i32
    %c0_i32_0 = arith.constant 0 : i32
    %c0_i32_1 = arith.constant 0 : i32
    return %c0_i32, %c0_i32_0 : i32, i32
  }
  func.func @transform_3(%arg0: i32) -> (i32, i32) {
    %c0_i32 = arith.constant 0 : i32
    %c0_i32_0 = arith.constant 0 : i32
    %c0_i32_1 = arith.constant 0 : i32
    return %c0_i32, %c0_i32_0 : i32, i32
  }
  func.func @transform_4(%arg0: i32) -> (i32, i32) {
    %c0_i32 = arith.constant 0 : i32
    %c0_i32_0 = arith.constant 0 : i32
    %c0_i32_1 = arith.constant 0 : i32
    return %c0_i32, %c0_i32_0 : i32, i32
  }
  func.func @transform_5(%arg0: i32) -> (i32, i32) {
    %c0_i32 = arith.constant 0 : i32
    %c0_i32_0 = arith.constant 0 : i32
    return %c0_i32, %arg0 : i32, i32
  }
}

</mosaic_0001>

<llo_original>
// kernel: tpu_custom_call.1
$region0: #{tpu_custom_call.1}
  #allocation0 [shape = 'u32[]', space=smem, size = 0x4, offset = 0x4, fixed_abs, tag = 'smem constant byte address 0x4 - core index']
  #allocation1 [shape = 'u32[144,128]{1,0:T(1,128)}', space=vmem, size = 0x12000, scoped, tag = 'internal scratch']
  %s0 = inlined_call_operand.vmem [shape: f32[10,8], index: 0, kind: input, shape index: {}]
  %s1 = inlined_call_operand.vmem [shape: f32[50,10], index: 1, kind: input, shape index: {}]
  %s2 = inlined_call_operand.vmem [shape: f32[50,1], index: 2, kind: input, shape index: {}]
  %s3 = inlined_call_operand.vmem [shape: f32[10,50], index: 3, kind: input, shape index: {}]
  %s4 = inlined_call_operand.vmem [shape: f32[10,1], index: 4, kind: input, shape index: {}]
  %s5 = inlined_call_operand.vmem [shape: f32[10,8], index: 5, kind: output, shape index: {}]
  %s6 = sld [smem:[#allocation0]]
  $region30: #{tpu_custom_call.1} parent=0
    _
  %s8 = ssub.s32 1, %s6
  %s9 = scalar_select 0, %s8, %s6
  // Predicated region
  $region2: #{tpu_custom_call.1} parent=0 // pred_check
    _
  $region3: #{tpu_custom_call.1} parent=0 // pred_check_branch
    %11 = sbr.rel (0) target = $region5
  $region4: #{tpu_custom_call.1} parent=0 // pred_region
    _
  $region5: #{tpu_custom_call.1} parent=0 // pred_fallthru
    _
  // Predicated region
  $region6: #{tpu_custom_call.1} parent=0 // pred_check
    _
  $region7: #{tpu_custom_call.1} parent=0 // pred_check_branch
    %13 = sbr.rel (0) target = $region9
  $region8: #{tpu_custom_call.1} parent=0 // pred_region
    _
  $region9: #{tpu_custom_call.1} parent=0 // pred_fallthru
    _
  // Predicated region
  $region10: #{tpu_custom_call.1} parent=0 // pred_check
    _
  $region11: #{tpu_custom_call.1} parent=0 // pred_check_branch
    %15 = sbr.rel (0) target = $region13
  $region12: #{tpu_custom_call.1} parent=0 // pred_region
    _
  $region13: #{tpu_custom_call.1} parent=0 // pred_fallthru
    _
  // Predicated region
  $region14: #{tpu_custom_call.1} parent=0 // pred_check
    _
  $region15: #{tpu_custom_call.1} parent=0 // pred_check_branch
    %17 = sbr.rel (0) target = $region17
  $region16: #{tpu_custom_call.1} parent=0 // pred_region
    _
  $region17: #{tpu_custom_call.1} parent=0 // pred_fallthru
    _
  // Predicated region
  $region18: #{tpu_custom_call.1} parent=0 // pred_check
    _
  $region19: #{tpu_custom_call.1} parent=0 // pred_check_branch
    %19 = sbr.rel (0) target = $region21
  $region20: #{tpu_custom_call.1} parent=0 // pred_region
    _
  $region21: #{tpu_custom_call.1} parent=0 // pred_fallthru
    _
  %v20 = vld [vmem:[%s1] sm:$0xff]
  %v21 = vld [vmem:[%s1 + $0x8] sm:$0xff]
  %v22 = vld [vmem:[%s1 + $0x10] sm:$0xff]
  %v23 = vld [vmem:[%s1 + $0x18] sm:$0xff]
  %v24 = vld [vmem:[%s1 + $0x20] sm:$0xff]
  %v25 = vld [vmem:[%s1 + $0x28] sm:$0xff]
  %v26 = vld [vmem:[%s1 + $0x30] sm:$0x3]
  %v27 = vld [vmem:[%s0] sm:$0xff]
  %v28 = vld [vmem:[%s0 + $0x8] sm:$0x3]
  %v29 = vld [vmem:[%s2] sm:$0xff]
  %v30 = vld [vmem:[%s2 + $0x8] sm:$0xff]
  %v31 = vld [vmem:[%s2 + $0x10] sm:$0xff]
  %v32 = vld [vmem:[%s2 + $0x18] sm:$0xff]
  %v33 = vld [vmem:[%s2 + $0x20] sm:$0xff]
  %v34 = vld [vmem:[%s2 + $0x28] sm:$0xff]
  %v35 = vld [vmem:[%s2 + $0x30] sm:$0x3]
  %37 = vset.pattern.permute.xlu0 0
  %38 = vperm.xlu0 %37, %v29
  %v39 = vpop.permute.xlu0 %38
  %42 = vset.pattern.permute.xlu0 0
  %43 = vperm.xlu0 %42, %v30
  %v44 = vpop.permute.xlu0 %43
  %47 = vset.pattern.permute.xlu0 0
  %48 = vperm.xlu0 %47, %v31
  %v49 = vpop.permute.xlu0 %48
  %52 = vset.pattern.permute.xlu0 0
  %53 = vperm.xlu0 %52, %v32
  %v54 = vpop.permute.xlu0 %53
  %57 = vset.pattern.permute.xlu0 0
  %58 = vperm.xlu0 %57, %v33
  %v59 = vpop.permute.xlu0 %58
  %62 = vset.pattern.permute.xlu0 0
  %63 = vperm.xlu0 %62, %v34
  %v64 = vpop.permute.xlu0 %63
  %67 = vset.pattern.permute.xlu0 0
  %68 = vperm.xlu0 %67, %v35
  %v69 = vpop.permute.xlu0 %68
  %vm71 = vcmask 80896
  %v73 = vsel %vm71, %v20, 0
  %v76 = vsel %vm71, %v21, 0
  %v79 = vsel %vm71, %v22, 0
  %v82 = vsel %vm71, %v23, 0
  %v85 = vsel %vm71, %v24, 0
  %v88 = vsel %vm71, %v25, 0
  %v91 = vsel %vm71, %v26, 0
  %vm93 = vcmask 1041408
  %v95 = vsel %vm93, %v28, 0
  %97 = vmatprep.subr.mxu0 0.0
  %98 = vmatpush1.msra.mxu0 %v27
  %99 = vmatprep.subr.mxu0 0.0
  %100 = vmatpush1.msra.mxu0 %v95
  %101 = vmatprep.subr.mxu0 0.0
  %102 = vmatpush1.msra.mxu0 0.0
  %103 = vmatprep.subr.mxu0 0.0
  %104 = vmatpush1.msra.mxu0 0.0
  %105 = vmatprep.subr.mxu0 0.0
  %106 = vmatpush1.msra.mxu0 0.0
  %107 = vmatprep.subr.mxu0 0.0
  %108 = vmatpush1.msra.mxu0 0.0
  %109 = vmatprep.subr.mxu0 0.0
  %110 = vmatpush1.msra.mxu0 0.0
  %111 = vmatprep.subr.mxu0 0.0
  %112 = vmatpush1.msra.mxu0 0.0
  %113 = vmatprep.subr.mxu0 0.0
  %114 = vmatpush1.msra.mxu0 0.0
  %115 = vmatprep.subr.mxu0 0.0
  %116 = vmatpush1.msra.mxu0 0.0
  %117 = vmatprep.subr.mxu0 0.0
  %118 = vmatpush1.msra.mxu0 0.0
  %119 = vmatprep.subr.mxu0 0.0
  %120 = vmatpush1.msra.mxu0 0.0
  %121 = vmatprep.subr.mxu0 0.0
  %122 = vmatpush1.msra.mxu0 0.0
  %123 = vmatprep.subr.mxu0 0.0
  %124 = vmatpush1.msra.mxu0 0.0
  %125 = vmatprep.subr.mxu0 0.0
  %126 = vmatpush1.msra.mxu0 0.0
  %127 = vmatprep.subr.mxu0 0.0
  %128 = vmatpush1.msra.mxu0 0.0
  %129 = vmatprep.subr.mxu0 0.0
  %130 = vmatpush1.msra.mxu0 0.0
  %131 = vmatprep.subr.mxu0 0.0
  %132 = vmatpush1.msra.mxu0 0.0
  %133 = vmatprep.subr.mxu0 0.0
  %134 = vmatpush1.msra.mxu0 0.0
  %135 = vmatprep.subr.mxu0 0.0
  %136 = vmatpush1.msra.mxu0 0.0
  %137 = vmatprep.subr.mxu0 0.0
  %138 = vmatpush1.msra.mxu0 0.0
  %139 = vmatprep.subr.mxu0 0.0
  %140 = vmatpush1.msra.mxu0 0.0
  %141 = vmatprep.subr.mxu0 0.0
  %142 = vmatpush1.msra.mxu0 0.0
  %143 = vmatprep.subr.mxu0 0.0
  %144 = vmatpush1.msra.mxu0 0.0
  %145 = vmatprep.subr.mxu0 0.0
  %146 = vmatpush1.msra.mxu0 0.0
  %147 = vmatprep.subr.mxu0 0.0
  %148 = vmatpush1.msra.mxu0 0.0
  %149 = vmatprep.subr.mxu0 0.0
  %150 = vmatpush1.msra.mxu0 0.0
  %151 = vmatprep.subr.mxu0 0.0
  %152 = vmatpush1.msra.mxu0 0.0
  %153 = vmatprep.subr.mxu0 0.0
  %154 = vmatpush1.msra.mxu0 0.0
  %155 = vmatprep.subr.mxu0 0.0
  %156 = vmatpush1.msra.mxu0 0.0
  %157 = vmatprep.subr.mxu0 0.0
  %158 = vmatpush1.msra.mxu0 0.0
  %159 = vmatprep.subr.mxu0 0.0
  %160 = vmatpush1.msra.mxu0 0.0
  %161 = vmatprep.mubr.f32.mxu0 0.0
  %162 = vmatmul.mubr.f32.gmra.mrb[0].mxu0 %v73
  %v163 = vpop.f32.mrb[0].mxu0
  %v164 = vadd.f32 %v39, %v163
  %v165 = vpop.f32.mrb[0].mxu0
  %166 = vmatprep.mubr.f32.mxu0 0.0
  %167 = vmatmul.mubr.f32.gmra.mrb[0].mxu0 %v76
  %v168 = vpop.f32.mrb[0].mxu0
  %v169 = vadd.f32 %v44, %v168
  %v170 = vpop.f32.mrb[0].mxu0
  %171 = vmatprep.mubr.f32.mxu0 0.0
  %172 = vmatmul.mubr.f32.gmra.mrb[0].mxu0 %v79
  %v173 = vpop.f32.mrb[0].mxu0
  %v174 = vadd.f32 %v49, %v173
  %v175 = vpop.f32.mrb[0].mxu0
  %176 = vmatprep.mubr.f32.mxu0 0.0
  %177 = vmatmul.mubr.f32.gmra.mrb[0].mxu0 %v82
  %v178 = vpop.f32.mrb[0].mxu0
  %v179 = vadd.f32 %v54, %v178
  %v180 = vpop.f32.mrb[0].mxu0
  %181 = vmatprep.mubr.f32.mxu0 0.0
  %182 = vmatmul.mubr.f32.gmra.mrb[0].mxu0 %v85
  %v183 = vpop.f32.mrb[0].mxu0
  %v184 = vadd.f32 %v59, %v183
  %v185 = vpop.f32.mrb[0].mxu0
  %186 = vmatprep.mubr.f32.mxu0 0.0
  %187 = vmatmul.mubr.f32.gmra.mrb[0].mxu0 %v88
  %v188 = vpop.f32.mrb[0].mxu0
  %v189 = vadd.f32 %v64, %v188
  %v190 = vpop.f32.mrb[0].mxu0
  %191 = vmatprep.mubr.f32.mxu0 0.0
  %192 = vmatmul.mubr.f32.gmra.mrb[0].mxu0 %v91
  %v193 = vpop.f32.mrb[0].mxu0
  %v194 = vadd.f32 %v69, %v193
  %v195 = vpop.f32.mrb[0].mxu0
  %196 = vdwg.mxu0
  %v197 = vmax.f32 %v164, 0.0
  %v198 = vmax.f32 %v169, 0.0
  %v199 = vmax.f32 %v174, 0.0
  %v200 = vmax.f32 %v179, 0.0
  %v201 = vmax.f32 %v184, 0.0
  %v202 = vmax.f32 %v189, 0.0
  %v203 = vmax.f32 %v194, 0.0
  %v204 = vld [vmem:[%s3] sm:$0xff]
  %v205 = vld [vmem:[%s3 + $0x8] sm:$0x3]
  %v206 = vld [vmem:[%s4] sm:$0xff]
  %v207 = vld [vmem:[%s4 + $0x8] sm:$0x3]
  %209 = vset.pattern.permute.xlu0 0
  %210 = vperm.xlu0 %209, %v206
  %v211 = vpop.permute.xlu0 %210
  %214 = vset.pattern.permute.xlu0 0
  %215 = vperm.xlu0 %214, %v207
  %v216 = vpop.permute.xlu0 %215
  %vm218 = vcmask 408576
  %v220 = vsel %vm218, %v204, 0
  %v223 = vsel %vm218, %v205, 0
  %v226 = vsel %vm93, %v203, 0
  %228 = vmatprep.subr.mxu0 0.0
  %229 = vmatpush1.msra.mxu0 %v197
  %230 = vmatprep.subr.mxu0 0.0
  %231 = vmatpush1.msra.mxu0 %v198
  %232 = vmatprep.subr.mxu0 0.0
  %233 = vmatpush1.msra.mxu0 %v199
  %234 = vmatprep.subr.mxu0 0.0
  %235 = vmatpush1.msra.mxu0 %v200
  %236 = vmatprep.subr.mxu0 0.0
  %237 = vmatpush1.msra.mxu0 %v201
  %238 = vmatprep.subr.mxu0 0.0
  %239 = vmatpush1.msra.mxu0 %v202
  %240 = vmatprep.subr.mxu0 0.0
  %241 = vmatpush1.msra.mxu0 %v226
  %242 = vmatprep.subr.mxu0 0.0
  %243 = vmatpush1.msra.mxu0 0.0
  %244 = vmatprep.subr.mxu0 0.0
  %245 = vmatpush1.msra.mxu0 0.0
  %246 = vmatprep.subr.mxu0 0.0
  %247 = vmatpush1.msra.mxu0 0.0
  %248 = vmatprep.subr.mxu0 0.0
  %249 = vmatpush1.msra.mxu0 0.0
  %250 = vmatprep.subr.mxu0 0.0
  %251 = vmatpush1.msra.mxu0 0.0
  %252 = vmatprep.subr.mxu0 0.0
  %253 = vmatpush1.msra.mxu0 0.0
  %254 = vmatprep.subr.mxu0 0.0
  %255 = vmatpush1.msra.mxu0 0.0
  %256 = vmatprep.subr.mxu0 0.0
  %257 = vmatpush1.msra.mxu0 0.0
  %258 = vmatprep.subr.mxu0 0.0
  %259 = vmatpush1.msra.mxu0 0.0
  %260 = vmatprep.subr.mxu0 0.0
  %261 = vmatpush1.msra.mxu0 0.0
  %262 = vmatprep.subr.mxu0 0.0
  %263 = vmatpush1.msra.mxu0 0.0
  %264 = vmatprep.subr.mxu0 0.0
  %265 = vmatpush1.msra.mxu0 0.0
  %266 = vmatprep.subr.mxu0 0.0
  %267 = vmatpush1.msra.mxu0 0.0
  %268 = vmatprep.subr.mxu0 0.0
  %269 = vmatpush1.msra.mxu0 0.0
  %270 = vmatprep.subr.mxu0 0.0
  %271 = vmatpush1.msra.mxu0 0.0
  %272 = vmatprep.subr.mxu0 0.0
  %273 = vmatpush1.msra.mxu0 0.0
  %274 = vmatprep.subr.mxu0 0.0
  %275 = vmatpush1.msra.mxu0 0.0
  %276 = vmatprep.subr.mxu0 0.0
  %277 = vmatpush1.msra.mxu0 0.0
  %278 = vmatprep.subr.mxu0 0.0
  %279 = vmatpush1.msra.mxu0 0.0
  %280 = vmatprep.subr.mxu0 0.0
  %281 = vmatpush1.msra.mxu0 0.0
  %282 = vmatprep.subr.mxu0 0.0
  %283 = vmatpush1.msra.mxu0 0.0
  %284 = vmatprep.subr.mxu0 0.0
  %285 = vmatpush1.msra.mxu0 0.0
  %286 = vmatprep.subr.mxu0 0.0
  %287 = vmatpush1.msra.mxu0 0.0
  %288 = vmatprep.subr.mxu0 0.0
  %289 = vmatpush1.msra.mxu0 0.0
  %290 = vmatprep.subr.mxu0 0.0
  %291 = vmatpush1.msra.mxu0 0.0
  %292 = vmatprep.mubr.f32.mxu0 0.0
  %293 = vmatmul.mubr.f32.gmra.mrb[0].mxu0 %v220
  %v294 = vpop.f32.mrb[0].mxu0
  %v295 = vadd.f32 %v211, %v294
  %v296 = vpop.f32.mrb[0].mxu0
  %297 = vmatprep.mubr.f32.mxu0 0.0
  %298 = vmatmul.mubr.f32.gmra.mrb[0].mxu0 %v223
  %v299 = vpop.f32.mrb[0].mxu0
  %v300 = vadd.f32 %v216, %v299
  %v301 = vpop.f32.mrb[0].mxu0
  %302 = vdwg.mxu0
  %303 = vst [vmem:[%s5] sm:$0xff] %v295
  %304 = vst [vmem:[%s5 + $0x8] sm:$0x3] %v300
  // Predicated region
  $region22: #{tpu_custom_call.1} parent=0 // pred_check
    _
  $region23: #{tpu_custom_call.1} parent=0 // pred_check_branch
    %306 = sbr.rel (0) target = $region25
  $region24: #{tpu_custom_call.1} parent=0 // pred_region
    _
  $region25: #{tpu_custom_call.1} parent=0 // pred_fallthru
    _
  // Predicated region
  $region26: #{tpu_custom_call.1} parent=0 // pred_check
    _
  $region27: #{tpu_custom_call.1} parent=0 // pred_check_branch
    %308 = sbr.rel (0) target = $region29
  $region28: #{tpu_custom_call.1} parent=0 // pred_region
    _
  $region29: #{tpu_custom_call.1} parent=0 // pred_fallthru
    _

</llo_original>
